<compile_context>
chip_gen: v5e
topology: v5e:2x2
jax: 0.10.0
libtpu: 0.0.40
codegen_flags: <defaults>
</compile_context>

<pallas_src>
import jax
import jax.numpy as jnp
from jax.experimental import pallas as pl
from jax.experimental.pallas import tpu as pltpu

IN_FEATURES = 28 * 28
OUT_FEATURES = 10
_LANES = 128


def _round_up(n, m):
    return (n + m - 1) // m * m


def _linear_logsoftmax_kernel(x_ref, w_ref, b_ref, o_ref):
    xv = x_ref[...]
    if not jnp.issubdtype(xv.dtype, jnp.floating):
        # In-kernel cast: x stays narrow (e.g. uint8) in HBM/VMEM, convert is
        # cheap VPU work fully hidden under the x DMA stream.
        xv = xv.astype(jnp.float32)
    # (TM, 784) @ (784, 10) on the MXU with f32 accumulation.
    z = jnp.dot(xv, w_ref[...], preferred_element_type=jnp.float32)
    z = z + b_ref[...]  # broadcast (1, 10) over rows
    # Numerically-stable row-wise log_softmax.  Padded rows in a partial final
    # tile may hold garbage -> per-row reductions keep it contained, and Pallas
    # masks the out-of-bounds output stores.
    m = jnp.max(z, axis=-1, keepdims=True)
    lse = jnp.log(jnp.sum(jnp.exp(z - m), axis=-1, keepdims=True)) + m
    o_ref[...] = (z - lse).astype(o_ref.dtype)


def _tile_rows_cap():
    """Per-generation batch-tile cap.  Big enough to amortize the ~0.35us
    grid-step overhead on the HBM-read-bound x stream, small enough that the
    padded double-buffered footprint fits scoped VMEM (v7x: 64 MiB/TC)."""
    try:
        kind = jax.devices()[0].device_kind.lower()
    except Exception:
        kind = ""
    if "v7" in kind:
        return 4096   # ~34 MiB padded f32 footprint, well under 64 MiB/TC
    if "v6" in kind:
        return 4096   # 128 MiB VMEM; per-step overhead drops to ~3.5%
    return 2048       # v5e (~0.8 TB/s) and fallback; ~22 MiB padded footprint


def _sublane_multiple(itemsize):
    # VMEM sublane tiling: f32 -> 8, bf16 -> 16, int8/uint8 -> 32.
    return {1: 32, 2: 16}.get(itemsize, 8)


@jax.jit
def hybrid_model_forward(x, weight, bias):
    """x: any shape with 28*28 trailing elements per row (e.g. (B, 1, 28, 28)),
    floating or integer dtype.  weight: (10, 784) PyTorch layout.  bias: (10,)."""
    x2d = x.reshape(-1, IN_FEATURES)
    x_is_float = jnp.issubdtype(x2d.dtype, jnp.floating)
    # Weight/bias prep is under jit, so it fuses / constant-folds.
    w_dtype = jnp.bfloat16 if (x_is_float and x2d.dtype == jnp.bfloat16) else jnp.float32
    w = weight.T.astype(w_dtype)                      # (784, 10)
    b = bias.reshape(1, OUT_FEATURES).astype(jnp.float32)

    B = x2d.shape[0]
    in_itemsize = jnp.dtype(x2d.dtype).itemsize
    sub = _sublane_multiple(in_itemsize)
    cap = _tile_rows_cap()

    # Tile selection.  Block second-to-last dim must be a multiple of the
    # sublane tile OR equal the full dim.  For B beyond one sublane tile we
    # force >= 2 grid steps so the "parallel" batch axis can use both v7x TCs.
    if B <= sub:
        tm = B
    else:
        tm = min(cap, _round_up(-(-B // 2), sub))
    grid = (pl.cdiv(B, tm),)

    # Padding-aware VMEM budget (lane dim rounded to 128, rows to sublane tile).
    x_cols_pad = _round_up(IN_FEATURES, _LANES)       # 784 -> 896
    out_cols_pad = _round_up(OUT_FEATURES, _LANES)    # 10  -> 128
    w_itemsize = jnp.dtype(w_dtype).itemsize
    vmem_limit = (
        2 * _round_up(tm, sub) * x_cols_pad * in_itemsize    # double-buffered x tiles
        + 2 * _round_up(tm, 8) * out_cols_pad * 4            # double-buffered output tiles
        + 2 * _round_up(IN_FEATURES, _sublane_multiple(w_itemsize)) * out_cols_pad * w_itemsize
        + 2 * 8 * out_cols_pad * 4                            # bias
        + (4 << 20)                                           # headroom
    )
    vmem_limit = int(min(vmem_limit, 48 << 20))   # stay under v7x's 64 MiB/TC

    return pl.pallas_call(
        _linear_logsoftmax_kernel,
        out_shape=jax.ShapeDtypeStruct((B, OUT_FEATURES), jnp.float32),
        grid=grid,
        in_specs=[
            pl.BlockSpec((tm, IN_FEATURES), lambda i: (i, 0)),
            # Constant index_map -> weight/bias DMA'd once, resident across steps.
            pl.BlockSpec((IN_FEATURES, OUT_FEATURES), lambda i: (0, 0)),
            pl.BlockSpec((1, OUT_FEATURES), lambda i: (0, 0)),
        ],
        # Keep the output (tm, 10): ~40 B/row of masked stores is fully hidden
        # under the ~3 KB/row x stream; padding to 128 lanes only adds traffic.
        out_specs=pl.BlockSpec((tm, OUT_FEATURES), lambda i: (i, 0)),
        compiler_params=pltpu.CompilerParams(
            dimension_semantics=("parallel",),    # independent rows -> megacore on v7x
            vmem_limit_bytes=vmem_limit,
        ),
    )(x2d, w, b)


def _init_params(key):
    # Deterministic init mimicking torch.nn.Linear default: U(-1/sqrt(in), 1/sqrt(in))
    kw, kb = jax.random.split(key)
    bound = 1.0 / jnp.sqrt(28.0 * 28.0)
    weight = jax.random.uniform(kw, (OUT_FEATURES, IN_FEATURES), jnp.float32, -bound, bound)
    bias = jax.random.uniform(kb, (OUT_FEATURES,), jnp.float32, -bound, bound)
    return weight, bias


def _reference(x2d_f32, weight, bias):
    logits = jax.lax.dot_general(
        x2d_f32, weight.T, (((1,), (0,)), ((), ())),
        precision=jax.lax.Precision.HIGHEST,
        preferred_element_type=jnp.float32,
    ) + bias
    return jax.nn.log_softmax(logits, axis=-1)


if __name__ == "__main__":
    key = jax.random.PRNGKey(0)
    k_x, k_x2, k_x3, k_p = jax.random.split(key, 4)
    weight, bias = _init_params(k_p)

    # 1) MNIST-like f32 input: batch=2, 1 channel, 28x28 (NCHW), single tile.
    x = jax.random.normal(k_x, (2, 1, 28, 28), jnp.float32)
    out = hybrid_model_forward(x, weight, bias)
    jax.block_until_ready(out)
    ref = _reference(x.reshape(-1, IN_FEATURES), weight, bias)
    assert out.shape == (2, OUT_FEATURES)
    assert jnp.allclose(out, ref, atol=1e-5), "mismatch vs reference (B=2, f32)"

    # 2) Partial final tile + >=2 grid steps: B=20 -> tm=16, grid=(2,), last
    #    tile has 4 valid rows (exercises the masked-store path).
    x20 = jax.random.normal(k_x2, (20, 1, 28, 28), jnp.float32)
    out20 = hybrid_model_forward(x20, weight, bias)
    jax.block_until_ready(out20)
    ref20 = _reference(x20.reshape(-1, IN_FEATURES), weight, bias)
    assert out20.shape == (20, OUT_FEATURES)
    assert jnp.allclose(out20, ref20, atol=1e-5), "mismatch vs reference (B=20, partial tile)"

    # 3) Integer (uint8 pixel) input: streamed natively, cast in-kernel.
    xu8 = jax.random.randint(k_x3, (4, 1, 28, 28), 0, 256, jnp.int32).astype(jnp.uint8)
    outu8 = hybrid_model_forward(xu8, weight, bias)
    jax.block_until_ready(outu8)
    assert outu8.shape == (4, OUT_FEATURES)
    assert bool(jnp.all(jnp.isfinite(outu8))), "non-finite log-probs (uint8 path)"
    row_sums = jnp.sum(jnp.exp(outu8), axis=-1)
    assert jnp.allclose(row_sums, 1.0, atol=1e-3), "log_softmax rows do not normalize (uint8 path)"

    print("KERNEL_OK")
</pallas_src>

<mosaic_0001>
module attributes {stable_mosaic.version = 11 : i64} {
  func.func @_linear_logsoftmax_kernel(%arg0: i32, %arg1: memref<2x784xf32, #tpu.memory_space<vmem>>, %arg2: memref<784x10xf32, #tpu.memory_space<vmem>>, %arg3: memref<1x10xf32, #tpu.memory_space<vmem>>, %arg4: memref<2x10xf32, #tpu.memory_space<vmem>>) attributes {dimension_semantics = [#tpu.dimension_semantics<parallel>], iteration_bounds = array<i64: 1>, scalar_prefetch = 0 : i64, scratch_operands = 0 : i64, tpu.core_type = #tpu.core_type<tc>, window_params = [{transform_indices = @transform_0, window_bounds = array<i64: 2, 784>}, {pipeline_mode = #tpu.pipeline_mode<synchronous>, transform_indices = @transform_1, window_bounds = array<i64: 784, 10>}, {pipeline_mode = #tpu.pipeline_mode<synchronous>, transform_indices = @transform_2, window_bounds = array<i64: 1, 10>}, {transform_indices = @transform_3, window_bounds = array<i64: 2, 10>}]} {
    %c0 = arith.constant 0 : index
    %c0_0 = arith.constant 0 : index
    %0 = vector.load %arg1[%c0, %c0_0] : memref<2x784xf32, #tpu.memory_space<vmem>>, vector<2x784xf32>
    %c0_1 = arith.constant 0 : index
    %c0_2 = arith.constant 0 : index
    %1 = vector.load %arg2[%c0_1, %c0_2] : memref<784x10xf32, #tpu.memory_space<vmem>>, vector<784x10xf32>
    %cst = arith.constant dense<0.000000e+00> : vector<2x10xf32>
    %2 = tpu.matmul %0, %1, %cst {dimension_numbers = #tpu.dot_dimension_numbers<[1], [0], [0], [1], [0, 0, 1, 1], [], []>} : vector<2x784xf32>, vector<784x10xf32>, vector<2x10xf32> -> vector<2x10xf32>
    %c0_3 = arith.constant 0 : index
    %c0_4 = arith.constant 0 : index
    %3 = vector.load %arg3[%c0_3, %c0_4] : memref<1x10xf32, #tpu.memory_space<vmem>>, vector<1x10xf32>
    %4 = vector.broadcast %3 : vector<1x10xf32> to vector<2x10xf32>
    %5 = arith.addf %2, %4 : vector<2x10xf32>
    %cst_5 = arith.constant dense<0xFF800000> : vector<2xf32>
    %6 = vector.multi_reduction <maximumf>, %5, %cst_5 [1] : vector<2x10xf32> to vector<2xf32>
    %7 = vector.shape_cast %6 : vector<2xf32> to vector<2x1xf32>
    %8 = vector.broadcast %7 : vector<2x1xf32> to vector<2x10xf32>
    %9 = arith.subf %5, %8 : vector<2x10xf32>
    %10 = math.exp %9 : vector<2x10xf32>
    %cst_6 = arith.constant dense<0.000000e+00> : vector<2xf32>
    %11 = vector.multi_reduction <add>, %10, %cst_6 [1] : vector<2x10xf32> to vector<2xf32>
    %12 = vector.shape_cast %11 : vector<2xf32> to vector<2x1xf32>
    %13 = math.log %12 : vector<2x1xf32>
    %14 = arith.addf %13, %7 : vector<2x1xf32>
    %15 = vector.broadcast %14 : vector<2x1xf32> to vector<2x10xf32>
    %16 = arith.subf %5, %15 : vector<2x10xf32>
    %c0_7 = arith.constant 0 : index
    %c0_8 = arith.constant 0 : index
    %17 = vector.load %arg4[%c0_7, %c0_8] : memref<2x10xf32, #tpu.memory_space<vmem>>, vector<2x10xf32>
    tpu.vector_store %arg4[%c0_7, %c0_8], %16 {strides = array<i32>} : memref<2x10xf32, #tpu.memory_space<vmem>>, vector<2x10xf32>,
    return
  }
  func.func @transform_0(%arg0: i32) -> (i32, i32) {
    %c0_i32 = arith.constant 0 : i32
    %c0_i32_0 = arith.constant 0 : i32
    return %arg0, %c0_i32 : i32, i32
  }
  func.func @transform_1(%arg0: i32) -> (i32, i32) {
    %c0_i32 = arith.constant 0 : i32
    %c0_i32_0 = arith.constant 0 : i32
    %c0_i32_1 = arith.constant 0 : i32
    return %c0_i32, %c0_i32_0 : i32, i32
  }
  func.func @transform_2(%arg0: i32) -> (i32, i32) {
    %c0_i32 = arith.constant 0 : i32
    %c0_i32_0 = arith.constant 0 : i32
    %c0_i32_1 = arith.constant 0 : i32
    return %c0_i32, %c0_i32_0 : i32, i32
  }
  func.func @transform_3(%arg0: i32) -> (i32, i32) {
    %c0_i32 = arith.constant 0 : i32
    %c0_i32_0 = arith.constant 0 : i32
    return %arg0, %c0_i32 : i32, i32
  }
}

</mosaic_0001>

<llo_original>
// kernel: hybrid_model_forward.1
$region0: #{hybrid_model_forward.1}
  #allocation0 [shape = 'u32[]', space=smem, size = 0x4, offset = 0x4, fixed_abs, tag = 'smem constant byte address 0x4 - core index']
  #allocation1 [shape = 'u32[72,128]{1,0:T(1,128)}', space=vmem, size = 0x9000, scoped, tag = 'internal scratch']
  %s0 = inlined_call_operand.vmem [shape: f32[2,784], index: 0, kind: input, shape index: {}]
  %s1 = inlined_call_operand.vmem [shape: f32[784,10], index: 1, kind: input, shape index: {}]
  %s2 = inlined_call_operand.vmem [shape: f32[1,10], index: 2, kind: input, shape index: {}]
  %s3 = inlined_call_operand.hbm [shape: f32[2,10], index: 3, kind: output, shape index: {}]
  %s4 = sld [smem:[#allocation0]]
  $region22: #{hybrid_model_forward.1} parent=0
    _
  %s6 = ssub.s32 1, %s4
  %s7 = scalar_select 0, %s6, %s4
  $region1: #{hybrid_model_forward.1} parent=0
    #allocation2 [shape = 'u8[1024]{0}', space=vmem, size = 0x400, scoped, tag = 'output window, operand 0, single buffered']
    #allocation3 [shape = 's32[1]{0}', space=sflag, size = 0x4, scoped, tag = 'scoped memory for hybrid_model_forward.1']
    %8 = vsyncpa [#allocation3], 0
    // Predicated region
    $region2: #{hybrid_model_forward.1} parent=1 // pred_check
      _
    $region3: #{hybrid_model_forward.1} parent=1 // pred_check_branch
      %10 = sbr.rel (0) target = $region5
    $region4: #{hybrid_model_forward.1} parent=1 // pred_region
      _
    $region5: #{hybrid_model_forward.1} parent=1 // pred_fallthru
      _
    // Predicated region
    $region6: #{hybrid_model_forward.1} parent=1 // pred_check
      _
    $region7: #{hybrid_model_forward.1} parent=1 // pred_check_branch
      %12 = sbr.rel (0) target = $region9
    $region8: #{hybrid_model_forward.1} parent=1 // pred_region
      _
    $region9: #{hybrid_model_forward.1} parent=1 // pred_fallthru
      _
    // Predicated region
    $region10: #{hybrid_model_forward.1} parent=1 // pred_check
      _
    $region11: #{hybrid_model_forward.1} parent=1 // pred_check_branch
      %14 = sbr.rel (0) target = $region13
    $region12: #{hybrid_model_forward.1} parent=1 // pred_region
      _
    $region13: #{hybrid_model_forward.1} parent=1 // pred_fallthru
      _
    %v15 = vld [vmem:[%s0] sm:$0xff]
    %v16 = vld [vmem:[%s0 + $0x8] sm:$0x3f]
    %v17 = vld [vmem:[%s1] sm:$0xff]
    %v18 = vld [vmem:[%s1 + $0x8] sm:$0xff]
    %v19 = vld [vmem:[%s1 + $0x10] sm:$0xff]
    %v20 = vld [vmem:[%s1 + $0x18] sm:$0xff]
    %v21 = vld [vmem:[%s1 + $0x20] sm:$0xff]
    %v22 = vld [vmem:[%s1 + $0x28] sm:$0xff]
    %v23 = vld [vmem:[%s1 + $0x30] sm:$0xff]
    %v24 = vld [vmem:[%s1 + $0x38] sm:$0xff]
    %v25 = vld [vmem:[%s1 + $0x40] sm:$0xff]
    %v26 = vld [vmem:[%s1 + $0x48] sm:$0xff]
    %v27 = vld [vmem:[%s1 + $0x50] sm:$0xff]
    %v28 = vld [vmem:[%s1 + $0x58] sm:$0xff]
    %v29 = vld [vmem:[%s1 + $0x60] sm:$0xff]
    %v30 = vld [vmem:[%s1 + $0x68] sm:$0xff]
    %v31 = vld [vmem:[%s1 + $0x70] sm:$0xff]
    %v32 = vld [vmem:[%s1 + $0x78] sm:$0xff]
    %v33 = vld [vmem:[%s1 + $0x80] sm:$0xff]
    %v34 = vld [vmem:[%s1 + $0x88] sm:$0xff]
    %v35 = vld [vmem:[%s1 + $0x90] sm:$0xff]
    %v36 = vld [vmem:[%s1 + $0x98] sm:$0xff]
    %v37 = vld [vmem:[%s1 + $0xa0] sm:$0xff]
    %v38 = vld [vmem:[%s1 + $0xa8] sm:$0xff]
    %v39 = vld [vmem:[%s1 + $0xb0] sm:$0xff]
    %v40 = vld [vmem:[%s1 + $0xb8] sm:$0xff]
    %v41 = vld [vmem:[%s1 + $0xc0] sm:$0xff]
    %v42 = vld [vmem:[%s1 + $0xc8] sm:$0xff]
    %v43 = vld [vmem:[%s1 + $0xd0] sm:$0xff]
    %v44 = vld [vmem:[%s1 + $0xd8] sm:$0xff]
    %v45 = vld [vmem:[%s1 + $0xe0] sm:$0xff]
    %v46 = vld [vmem:[%s1 + $0xe8] sm:$0xff]
    %v47 = vld [vmem:[%s1 + $0xf0] sm:$0xff]
    %v48 = vld [vmem:[%s1 + $0xf8] sm:$0xff]
    %v49 = vld [vmem:[%s1 + $0x100] sm:$0xff]
    %v50 = vld [vmem:[%s1 + $0x108] sm:$0xff]
    %v51 = vld [vmem:[%s1 + $0x110] sm:$0xff]
    %v52 = vld [vmem:[%s1 + $0x118] sm:$0xff]
    %v53 = vld [vmem:[%s1 + $0x120] sm:$0xff]
    %v54 = vld [vmem:[%s1 + $0x128] sm:$0xff]
    %v55 = vld [vmem:[%s1 + $0x130] sm:$0xff]
    %v56 = vld [vmem:[%s1 + $0x138] sm:$0xff]
    %v57 = vld [vmem:[%s1 + $0x140] sm:$0xff]
    %v58 = vld [vmem:[%s1 + $0x148] sm:$0xff]
    %v59 = vld [vmem:[%s1 + $0x150] sm:$0xff]
    %v60 = vld [vmem:[%s1 + $0x158] sm:$0xff]
    %v61 = vld [vmem:[%s1 + $0x160] sm:$0xff]
    %v62 = vld [vmem:[%s1 + $0x168] sm:$0xff]
    %v63 = vld [vmem:[%s1 + $0x170] sm:$0xff]
    %v64 = vld [vmem:[%s1 + $0x178] sm:$0xff]
    %v65 = vld [vmem:[%s1 + $0x180] sm:$0xff]
    %v66 = vld [vmem:[%s1 + $0x188] sm:$0xff]
    %v67 = vld [vmem:[%s1 + $0x190] sm:$0xff]
    %v68 = vld [vmem:[%s1 + $0x198] sm:$0xff]
    %v69 = vld [vmem:[%s1 + $0x1a0] sm:$0xff]
    %v70 = vld [vmem:[%s1 + $0x1a8] sm:$0xff]
    %v71 = vld [vmem:[%s1 + $0x1b0] sm:$0xff]
    %v72 = vld [vmem:[%s1 + $0x1b8] sm:$0xff]
    %v73 = vld [vmem:[%s1 + $0x1c0] sm:$0xff]
    %v74 = vld [vmem:[%s1 + $0x1c8] sm:$0xff]
    %v75 = vld [vmem:[%s1 + $0x1d0] sm:$0xff]
    %v76 = vld [vmem:[%s1 + $0x1d8] sm:$0xff]
    %v77 = vld [vmem:[%s1 + $0x1e0] sm:$0xff]
    %v78 = vld [vmem:[%s1 + $0x1e8] sm:$0xff]
    %v79 = vld [vmem:[%s1 + $0x1f0] sm:$0xff]
    %v80 = vld [vmem:[%s1 + $0x1f8] sm:$0xff]
    %v81 = vld [vmem:[%s1 + $0x200] sm:$0xff]
    %v82 = vld [vmem:[%s1 + $0x208] sm:$0xff]
    %v83 = vld [vmem:[%s1 + $0x210] sm:$0xff]
    %v84 = vld [vmem:[%s1 + $0x218] sm:$0xff]
    %v85 = vld [vmem:[%s1 + $0x220] sm:$0xff]
    %v86 = vld [vmem:[%s1 + $0x228] sm:$0xff]
    %v87 = vld [vmem:[%s1 + $0x230] sm:$0xff]
    %v88 = vld [vmem:[%s1 + $0x238] sm:$0xff]
    %v89 = vld [vmem:[%s1 + $0x240] sm:$0xff]
    %v90 = vld [vmem:[%s1 + $0x248] sm:$0xff]
    %v91 = vld [vmem:[%s1 + $0x250] sm:$0xff]
    %v92 = vld [vmem:[%s1 + $0x258] sm:$0xff]
    %v93 = vld [vmem:[%s1 + $0x260] sm:$0xff]
    %v94 = vld [vmem:[%s1 + $0x268] sm:$0xff]
    %v95 = vld [vmem:[%s1 + $0x270] sm:$0xff]
    %v96 = vld [vmem:[%s1 + $0x278] sm:$0xff]
    %v97 = vld [vmem:[%s1 + $0x280] sm:$0xff]
    %v98 = vld [vmem:[%s1 + $0x288] sm:$0xff]
    %v99 = vld [vmem:[%s1 + $0x290] sm:$0xff]
    %v100 = vld [vmem:[%s1 + $0x298] sm:$0xff]
    %v101 = vld [vmem:[%s1 + $0x2a0] sm:$0xff]
    %v102 = vld [vmem:[%s1 + $0x2a8] sm:$0xff]
    %v103 = vld [vmem:[%s1 + $0x2b0] sm:$0xff]
    %v104 = vld [vmem:[%s1 + $0x2b8] sm:$0xff]
    %v105 = vld [vmem:[%s1 + $0x2c0] sm:$0xff]
    %v106 = vld [vmem:[%s1 + $0x2c8] sm:$0xff]
    %v107 = vld [vmem:[%s1 + $0x2d0] sm:$0xff]
    %v108 = vld [vmem:[%s1 + $0x2d8] sm:$0xff]
    %v109 = vld [vmem:[%s1 + $0x2e0] sm:$0xff]
    %v110 = vld [vmem:[%s1 + $0x2e8] sm:$0xff]
    %v111 = vld [vmem:[%s1 + $0x2f0] sm:$0xff]
    %v112 = vld [vmem:[%s1 + $0x2f8] sm:$0xff]
    %v113 = vld [vmem:[%s1 + $0x300] sm:$0xff]
    %v114 = vld [vmem:[%s1 + $0x308] sm:$0xff]
    %v115 = vld [vmem:[%s2] sm:$0x1]
    %v117 = vperm.slane %v115, 0
    %121 = vst [vmem:[#allocation1] ss:$4 sm:$0xff] %v15
    %s122 = scalar_lea.vmem [#allocation1], 32
    %123 = vst [vmem:[%s122] ss:$4 sm:$0xff] %v16
    %v124 = vld.sshfl [vmem:[#allocation1] sm:$0xff pattern:$0x73625140]
    %v125 = vld.sshfl [vmem:[#allocation1 + $0x8] sm:$0xff pattern:$0x73625140]
    %v126 = vld.sshfl [vmem:[#allocation1 + $0x10] sm:$0xff pattern:$0x73625140]
    %v127 = vld.sshfl [vmem:[#allocation1 + $0x18] sm:$0xff pattern:$0x73625140]
    %v128 = vld.sshfl [vmem:[#allocation1 + $0x20] sm:$0xff pattern:$0x73625140]
    %v129 = vld.sshfl [vmem:[#allocation1 + $0x28] sm:$0xff pattern:$0x73625140]
    %v130 = vld.sshfl [vmem:[#allocation1 + $0x30] sm:$0xff pattern:$0x73625140]
    %vm137 = vcmask 130048
    %v138 = vsel %vm137, %v130, 0
    %140 = vmatpush.msra.mxu0 %v32
    %141 = vmatpush.msra.mxu0 %v31
    %142 = vmatpush.msra.mxu0 %v30
    %143 = vmatpush.msra.mxu0 %v29
    %144 = vmatpush.msra.mxu0 %v28
    %145 = vmatpush.msra.mxu0 %v27
    %146 = vmatpush.msra.mxu0 %v26
    %147 = vmatpush.msra.mxu0 %v25
    %148 = vmatpush.msra.mxu0 %v24
    %149 = vmatpush.msra.mxu0 %v23
    %150 = vmatpush.msra.mxu0 %v22
    %151 = vmatpush.msra.mxu0 %v21
    %152 = vmatpush.msra.mxu0 %v20
    %153 = vmatpush.msra.mxu0 %v19
    %154 = vmatpush.msra.mxu0 %v18
    %155 = vmatpush.msra.mxu0 %v17
    %156 = vmatmul.f32.gmra.mxu0 %v124
    %v157 = vpop.f32.mrf.mxu0
    %v158 = vadd.f32 %v117, %v157
    %159 = vdwg.mxu0
    %160 = vmatpush.msra.mxu0 %v48
    %161 = vmatpush.msra.mxu0 %v47
    %162 = vmatpush.msra.mxu0 %v46
    %163 = vmatpush.msra.mxu0 %v45
    %164 = vmatpush.msra.mxu0 %v44
    %165 = vmatpush.msra.mxu0 %v43
    %166 = vmatpush.msra.mxu0 %v42
    %167 = vmatpush.msra.mxu0 %v41
    %168 = vmatpush.msra.mxu0 %v40
    %169 = vmatpush.msra.mxu0 %v39
    %170 = vmatpush.msra.mxu0 %v38
    %171 = vmatpush.msra.mxu0 %v37
    %172 = vmatpush.msra.mxu0 %v36
    %173 = vmatpush.msra.mxu0 %v35
    %174 = vmatpush.msra.mxu0 %v34
    %175 = vmatpush.msra.mxu0 %v33
    %176 = vmatmul.f32.gmra.mxu0 %v125
    %v177 = vpop.f32.mrf.mxu0
    %v178 = vadd.f32 %v158, %v177
    %179 = vdwg.mxu0
    %180 = vmatpush.msra.mxu0 %v64
    %181 = vmatpush.msra.mxu0 %v63
    %182 = vmatpush.msra.mxu0 %v62
    %183 = vmatpush.msra.mxu0 %v61
    %184 = vmatpush.msra.mxu0 %v60
    %185 = vmatpush.msra.mxu0 %v59
    %186 = vmatpush.msra.mxu0 %v58
    %187 = vmatpush.msra.mxu0 %v57
    %188 = vmatpush.msra.mxu0 %v56
    %189 = vmatpush.msra.mxu0 %v55
    %190 = vmatpush.msra.mxu0 %v54
    %191 = vmatpush.msra.mxu0 %v53
    %192 = vmatpush.msra.mxu0 %v52
    %193 = vmatpush.msra.mxu0 %v51
    %194 = vmatpush.msra.mxu0 %v50
    %195 = vmatpush.msra.mxu0 %v49
    %196 = vmatmul.f32.gmra.mxu0 %v126
    %v197 = vpop.f32.mrf.mxu0
    %v198 = vadd.f32 %v178, %v197
    %199 = vdwg.mxu0
    %200 = vmatpush.msra.mxu0 %v80
    %201 = vmatpush.msra.mxu0 %v79
    %202 = vmatpush.msra.mxu0 %v78
    %203 = vmatpush.msra.mxu0 %v77
    %204 = vmatpush.msra.mxu0 %v76
    %205 = vmatpush.msra.mxu0 %v75
    %206 = vmatpush.msra.mxu0 %v74
    %207 = vmatpush.msra.mxu0 %v73
    %208 = vmatpush.msra.mxu0 %v72
    %209 = vmatpush.msra.mxu0 %v71
    %210 = vmatpush.msra.mxu0 %v70
    %211 = vmatpush.msra.mxu0 %v69
    %212 = vmatpush.msra.mxu0 %v68
    %213 = vmatpush.msra.mxu0 %v67
    %214 = vmatpush.msra.mxu0 %v66
    %215 = vmatpush.msra.mxu0 %v65
    %216 = vmatmul.f32.gmra.mxu0 %v127
    %v217 = vpop.f32.mrf.mxu0
    %v218 = vadd.f32 %v198, %v217
    %219 = vdwg.mxu0
    %220 = vmatpush.msra.mxu0 %v96
    %221 = vmatpush.msra.mxu0 %v95
    %222 = vmatpush.msra.mxu0 %v94
    %223 = vmatpush.msra.mxu0 %v93
    %224 = vmatpush.msra.mxu0 %v92
    %225 = vmatpush.msra.mxu0 %v91
    %226 = vmatpush.msra.mxu0 %v90
    %227 = vmatpush.msra.mxu0 %v89
    %228 = vmatpush.msra.mxu0 %v88
    %229 = vmatpush.msra.mxu0 %v87
    %230 = vmatpush.msra.mxu0 %v86
    %231 = vmatpush.msra.mxu0 %v85
    %232 = vmatpush.msra.mxu0 %v84
    %233 = vmatpush.msra.mxu0 %v83
    %234 = vmatpush.msra.mxu0 %v82
    %235 = vmatpush.msra.mxu0 %v81
    %236 = vmatmul.f32.gmra.mxu0 %v128
    %v237 = vpop.f32.mrf.mxu0
    %v238 = vadd.f32 %v218, %v237
    %239 = vdwg.mxu0
    %240 = vmatpush.msra.mxu0 %v112
    %241 = vmatpush.msra.mxu0 %v111
    %242 = vmatpush.msra.mxu0 %v110
    %243 = vmatpush.msra.mxu0 %v109
    %244 = vmatpush.msra.mxu0 %v108
    %245 = vmatpush.msra.mxu0 %v107
    %246 = vmatpush.msra.mxu0 %v106
    %247 = vmatpush.msra.mxu0 %v105
    %248 = vmatpush.msra.mxu0 %v104
    %249 = vmatpush.msra.mxu0 %v103
    %250 = vmatpush.msra.mxu0 %v102
    %251 = vmatpush.msra.mxu0 %v101
    %252 = vmatpush.msra.mxu0 %v100
    %253 = vmatpush.msra.mxu0 %v99
    %254 = vmatpush.msra.mxu0 %v98
    %255 = vmatpush.msra.mxu0 %v97
    %256 = vmatmul.f32.gmra.mxu0 %v129
    %v257 = vpop.f32.mrf.mxu0
    %v258 = vadd.f32 %v238, %v257
    %259 = vdwg.mxu0
    %260 = vmatpush.msra.mxu0 0.0
    %261 = vmatpush.msra.mxu0 0.0
    %262 = vmatpush.msra.mxu0 0.0
    %263 = vmatpush.msra.mxu0 0.0
    %264 = vmatpush.msra.mxu0 0.0
    %265 = vmatpush.msra.mxu0 0.0
    %266 = vmatpush.msra.mxu0 0.0
    %267 = vmatpush.msra.mxu0 0.0
    %268 = vmatpush.msra.mxu0 0.0
    %269 = vmatpush.msra.mxu0 0.0
    %270 = vmatpush.msra.mxu0 0.0
    %271 = vmatpush.msra.mxu0 0.0
    %272 = vmatpush.msra.mxu0 0.0
    %273 = vmatpush.msra.mxu0 0.0
    %274 = vmatpush.msra.mxu0 %v114
    %275 = vmatpush.msra.mxu0 %v113
    %276 = vmatmul.f32.gmra.mxu0 %v138
    %v277 = vpop.f32.mrf.mxu0
    %v278 = vadd.f32 %v258, %v277
    %279 = vdwg.mxu0
    %vm280 = vcmask 74752
    %v281 = vsel %vm280, %v278, -inf
    %282 = vmax.xlane.f32.xlu0 %v281
    %v283 = vpop.xlane.xlu0 %282
    %v284 = vsub.f32 %v278, %v283
    %v285 = vmul.f32 %v284, 1.442695
    %v286 = vpow.pop %v285
    %v287 = vsel %vm280, %v286, 0.0
    %288 = vadd.xlane.f32.xlu0 %v287
    %v289 = vpop.xlane.xlu0 %288
    %v290 = vlog2.pop %v289
    %v291 = vmul.f32 %v290, 0.6931472
    %v292 = vadd.f32 %v291, %v283
    %v293 = vsub.f32 %v278, %v292
    %294 = vst.msk [vmem:[#allocation2] sm:$0x3] %vm280, %v293
    // Predicated region
    $region14: #{hybrid_model_forward.1} parent=1 // pred_check
      _
    $region15: #{hybrid_model_forward.1} parent=1 // pred_check_branch
      %296 = sbr.rel (0) target = $region17
    $region16: #{hybrid_model_forward.1} parent=1 // pred_region
      %298 = vsyncadd [#allocation3], 0
      %s300 = sshll.u32 [#allocation2], 4
      %s301 = int_to_ptr.vmem [resolvable:$true] %s300
      %s302 = sshll.u32 %s3, 4
      %s303 = int_to_ptr.hbm [resolvable:$true] %s302
      %305 = dma.vmem_to_hbm [thread:$0]  %s301, 32, %s303, [#allocation3]
    $region17: #{hybrid_model_forward.1} parent=1 // pred_fallthru
      _
    // Predicated region
    $region18: #{hybrid_model_forward.1} parent=1 // pred_check
      _
    $region19: #{hybrid_model_forward.1} parent=1 // pred_check_branch
      %307 = sbr.rel (0) target = $region21
    $region20: #{hybrid_model_forward.1} parent=1 // pred_region
      %309 = dma.done [#allocation3], 32
    $region21: #{hybrid_model_forward.1} parent=1 // pred_fallthru
      _
    %310 = vsyncpa [#allocation3], 1

</llo_original>
